<compile_context>
chip_gen: v7x
topology: tpu7x:2x2x1
jax: 0.10.0
libtpu: 0.0.40
codegen_flags: <defaults>
</compile_context>

<pallas_src>
import functools

import numpy as np
import jax
import jax.numpy as jnp
from jax.experimental import pallas as pl
from jax.experimental.pallas import tpu as pltpu


def _round_up(x, mult):
    return ((x + mult - 1) // mult) * mult


def _plan_spatial_tiling(HW, m, target):
    """Pick (S_blk, m_pad) such that: S_blk | HW, 128 | S_blk, m_pad | S_blk,
    128 | m_pad, m_pad >= m.  Prefer the largest S_blk <= target, otherwise the
    smallest feasible block (worst case the whole image)."""
    def margin_for(sblk):
        for d in range(128, sblk + 1, 128):
            if sblk % d == 0 and d >= m:
                return d
        return None

    feasible = []
    for sblk in range(128, HW + 1, 128):
        if HW % sblk == 0:
            mp = margin_for(sblk)
            if mp is not None:
                feasible.append((sblk, mp))
    assert feasible, "need H*W to be a multiple of 128 and >= the conv halo"
    small = [f for f in feasible if f[0] <= target]
    return max(small) if small else min(feasible)


def _adaptor_kernel(xl_ref, xc_ref, xr_ref, w_ref, o_ref, xm_ref, slab_ref,
                    *, W, K, S_blk, m_pad, C_pad):
    """One (batch, spatial-block) step of conv2d(x, w), stride 1, zero-pad K//2,
    no bias.  Layout: channels on sublanes, flattened (h*W + w) spatial on lanes.

    xl_ref  : (1, C, m_pad)   left halo  = m_pad flat elements before the block
    xc_ref  : (1, C, S_blk)   current spatial block
    xr_ref  : (1, C, m_pad)   right halo = m_pad flat elements after the block
    w_ref   : (C, K*K*C_pad)  w_ref[o, (kh*K + kw)*C_pad + i] == weight[o, i, kh, kw]
    o_ref   : (1, C, S_blk)
    xm_ref  : (C, m_pad + S_blk + m_pad)   staging buffer (compute dtype)
    slab_ref: (K*K*C_pad, S_blk)           im2col slab (compute dtype)
    """
    C = xc_ref.shape[1]
    p = K // 2
    s = pl.program_id(1)
    n_s = pl.num_programs(1)

    # ---- Stage current block + halos.  All stores are 128-lane aligned. ----
    xm_ref[:, pl.ds(m_pad, S_blk)] = xc_ref[0]

    @pl.when(s == 0)                       # image top: out-of-image rows read as 0
    def _():
        xm_ref[:, pl.ds(0, m_pad)] = jnp.zeros((C, m_pad), xm_ref.dtype)

    @pl.when(s > 0)
    def _():
        xm_ref[:, pl.ds(0, m_pad)] = xl_ref[0]

    @pl.when(s == n_s - 1)                 # image bottom
    def _():
        xm_ref[:, pl.ds(m_pad + S_blk, m_pad)] = jnp.zeros((C, m_pad), xm_ref.dtype)

    @pl.when(s < n_s - 1)
    def _():
        xm_ref[:, pl.ds(m_pad + S_blk, m_pad)] = xr_ref[0]

    # ---- Column-validity masks: only dw != 0 taps need one, and it is a
    # lane-only (1, S_blk) mask broadcast over channels.  Vertically
    # out-of-image taps land in the zero-filled halo above, so no row masks
    # and no per-lane h/w div-mod over full (C, S_blk) tiles. ----
    col = (s * S_blk + jax.lax.broadcasted_iota(jnp.int32, (1, S_blk), 1)) % W
    col_ok = {dw: (col + dw >= 0) & (col + dw < W)
              for dw in range(-p, p + 1) if dw != 0}

    # ---- im2col: stack the K*K shifted/masked taps into the slab so the whole
    # conv is a single matmul with contraction depth K*K*C_pad. ----
    pad_rows = None
    if C_pad > C:
        pad_rows = jnp.zeros((C_pad - C, S_blk), xm_ref.dtype)
    for kh in range(K):
        for kw in range(K):
            dh, dw = kh - p, kw - p
            tap = xm_ref[:, pl.ds(m_pad + dh * W + dw, S_blk)]
            if dw != 0:
                tap = jnp.where(col_ok[dw], tap, jnp.zeros_like(tap))
            if pad_rows is not None:
                # Pad to C_pad rows so the store below is a full, aligned tile
                # store and the padded contraction rows are exact zeros.
                tap = jnp.concatenate([tap, pad_rows], axis=0)
            slab_ref[pl.ds((kh * K + kw) * C_pad, C_pad), :] = tap

    # One deep matmul: bf16 operands, f32 accumulation on the MXU.
    out = jnp.dot(w_ref[...], slab_ref[...], preferred_element_type=jnp.float32)
    o_ref[0] = out.astype(o_ref.dtype)


@functools.partial(jax.jit, static_argnames=("compute_dtype", "spatial_block_target"))
def adaptor_conv(x_nchw, weight_oihw, *, compute_dtype=jnp.bfloat16,
                 spatial_block_target=4096):
    """TargetAdapt adaptor: Conv2d(C, C, K, stride=1, padding=K//2, bias=False)."""
    N, C, H, W = x_nchw.shape
    C_out, C_in, K, K2 = weight_oihw.shape
    assert C_out == C and C_in == C and K == K2, "adaptor conv must be square, C->C"
    p = K // 2
    HW = H * W
    m = p * W + p                               # flat-index halo of the farthest tap
    assert HW % 128 == 0, "flattened spatial size must be a multiple of 128"
    S_blk, m_pad = _plan_spatial_tiling(HW, m, spatial_block_target)
    n_sblk = HW // S_blk
    r = S_blk // m_pad                          # halo block stride, in m_pad units
    n_mblk = HW // m_pad
    C_pad = _round_up(C, 16)                    # full packed-tile slab stores

    # Free contiguous reshape + cast to the bf16 MXU operand dtype (halves HBM
    # DMA bytes into the kernel; accumulation stays f32 inside the kernel).
    x_flat = x_nchw.reshape(N, C, HW).astype(compute_dtype)
    # weight -> (C_out, K*K*C_pad), matching the slab's tap-major / channel-minor rows.
    w_t = jnp.transpose(weight_oihw, (0, 2, 3, 1))                  # (C, K, K, C)
    if C_pad > C:
        w_t = jnp.pad(w_t, ((0, 0), (0, 0), (0, 0), (0, C_pad - C)))
    w2 = w_t.reshape(C, K * K * C_pad).astype(compute_dtype)

    kernel = functools.partial(_adaptor_kernel, W=W, K=K, S_blk=S_blk,
                               m_pad=m_pad, C_pad=C_pad)
    out_flat = pl.pallas_call(
        kernel,
        out_shape=jax.ShapeDtypeStruct((N, C, HW), x_nchw.dtype),
        grid_spec=pltpu.PrefetchScalarGridSpec(
            num_scalar_prefetch=0,
            grid=(N, n_sblk),
            in_specs=[
                # left halo: the m_pad flat elements just before the block
                pl.BlockSpec((1, C, m_pad),
                             lambda n, s: (n, 0, jnp.maximum(s * r - 1, 0))),
                # current spatial block
                pl.BlockSpec((1, C, S_blk), lambda n, s: (n, 0, s)),
                # right halo: the m_pad flat elements just after the block
                pl.BlockSpec((1, C, m_pad),
                             lambda n, s: (n, 0, jnp.minimum(s * r + r, n_mblk - 1))),
                # weights: grid-invariant index_map -> stays VMEM resident
                pl.BlockSpec((C, K * K * C_pad), lambda n, s: (0, 0)),
            ],
            out_specs=pl.BlockSpec((1, C, S_blk), lambda n, s: (n, 0, s)),
            scratch_shapes=[
                pltpu.VMEM((C, m_pad + S_blk + m_pad), compute_dtype),
                pltpu.VMEM((K * K * C_pad, S_blk), compute_dtype),
            ],
        ),
        compiler_params=pltpu.CompilerParams(
            # Both axes independent: shards across both v7x TensorCores even
            # for batch-1 inference; no-op on single-TC v5e/v6e.
            dimension_semantics=("parallel", "parallel")),
    )(x_flat, x_flat, x_flat, w2)
    return out_flat.reshape(N, C, H, W)


def make_identity_weight(channels, kernel_size=3):
    """Replicates identity_init(): w[i, i, k//2, k//2] = 1, zeros elsewhere."""
    k = kernel_size
    w = np.zeros((channels, channels, k, k), np.float32)
    for i in range(channels):
        w[i, i, k // 2, k // 2] = 1.0
    return jnp.asarray(w)


def _xla_bf16_conv_ref(x, w, K):
    """XLA reference with the same numerics: bf16 operands, f32 accumulation."""
    return jax.lax.conv_general_dilated(
        x.astype(jnp.bfloat16), w.astype(jnp.bfloat16),
        window_strides=(1, 1),
        padding=((K // 2, K // 2), (K // 2, K // 2)),
        dimension_numbers=("NCHW", "OIHW", "NCHW"),
        preferred_element_type=jnp.float32)


if __name__ == "__main__":
    key = jax.random.PRNGKey(0)
    key_x, key_w, key_x2, key_w2 = jax.random.split(key, 4)
    K = 3

    # --- Config 1: batch=2, C=4, 16x16.  A small spatial_block_target forces
    # two spatial blocks, exercising the first/last-block (zero-halo) paths. ---
    N, C, H, W = 2, 4, 16, 16
    x = jax.random.normal(key_x, (N, C, H, W), dtype=jnp.float32)

    # 1) As constructed by TargetAdapt: identity-initialized adaptor => output
    #    equals input up to bf16 rounding of the MXU operands.
    w_id = make_identity_weight(C, K)
    y_id = jax.block_until_ready(adaptor_conv(x, w_id, spatial_block_target=128))
    np.testing.assert_allclose(np.asarray(y_id), np.asarray(x), rtol=0, atol=2e-2)

    # 2) Random (post-finetuning) weights vs an XLA conv reference evaluated
    #    with matching bf16-operand / f32-accumulate numerics.
    w_rand = 0.1 * jax.random.normal(key_w, (C, C, K, K), dtype=jnp.float32)
    y = jax.block_until_ready(adaptor_conv(x, w_rand, spatial_block_target=128))
    y_ref = _xla_bf16_conv_ref(x, w_rand, K)
    np.testing.assert_allclose(np.asarray(y), np.asarray(y_ref), rtol=1e-2, atol=1e-2)

    # --- Config 2: 32x32 image split into 4 spatial blocks -> exercises the
    # interior-block halo path (real neighbor-row data in both margins). ---
    N2, C2, H2, W2 = 1, 8, 32, 32
    x2 = jax.random.normal(key_x2, (N2, C2, H2, W2), dtype=jnp.float32)
    w_rand2 = 0.1 * jax.random.normal(key_w2, (C2, C2, K, K), dtype=jnp.float32)
    y2 = jax.block_until_ready(adaptor_conv(x2, w_rand2, spatial_block_target=256))
    y2_ref = _xla_bf16_conv_ref(x2, w_rand2, K)
    np.testing.assert_allclose(np.asarray(y2), np.asarray(y2_ref), rtol=1e-2, atol=1e-2)

    # TODO(synk): the frozen pretrained backbone TargetAdapt wraps
    # (DehazeFormer / FFA / MB_TaylorFormer) is not reimplemented here; only the
    # injected adaptor convolution (the new learnable op) is kernelized.
    print("KERNEL_OK")
</pallas_src>

<mosaic_0001>
module attributes {stable_mosaic.version = 11 : i64} {
  func.func @_adaptor_kernel(%arg0: i32, %arg1: i32, %arg2: memref<1x4x128xbf16, #tpu.memory_space<vmem>>, %arg3: memref<1x4x128xbf16, #tpu.memory_space<vmem>>, %arg4: memref<1x4x128xbf16, #tpu.memory_space<vmem>>, %arg5: memref<4x144xbf16, #tpu.memory_space<vmem>>, %arg6: memref<1x4x128xf32, #tpu.memory_space<vmem>>, %arg7: memref<4x384xbf16, #tpu.memory_space<vmem>>, %arg8: memref<144x128xbf16, #tpu.memory_space<vmem>>) attributes {dimension_semantics = [#tpu.dimension_semantics<parallel>, #tpu.dimension_semantics<parallel>], iteration_bounds = array<i64: 2, 2>, scalar_prefetch = 0 : i64, scratch_operands = 2 : i64, tpu.core_type = #tpu.core_type<tc>, window_params = [{transform_indices = @transform_0, window_bounds = array<i64: 1, 4, 128>}, {transform_indices = @transform_1, window_bounds = array<i64: 1, 4, 128>}, {transform_indices = @transform_2, window_bounds = array<i64: 1, 4, 128>}, {pipeline_mode = #tpu.pipeline_mode<synchronous>, transform_indices = @transform_3, window_bounds = array<i64: 4, 144>}, {transform_indices = @transform_4, window_bounds = array<i64: 1, 4, 128>}]} {
    %c0 = arith.constant 0 : index
    %c0_0 = arith.constant 0 : index
    %c0_1 = arith.constant 0 : index
    %0 = vector.load %arg3[%c0, %c0_0, %c0_1] : memref<1x4x128xbf16, #tpu.memory_space<vmem>>, vector<1x4x128xbf16>
    %1 = vector.shape_cast %0 : vector<1x4x128xbf16> to vector<4x128xbf16>
    %c0_2 = arith.constant 0 : index
    %c128 = arith.constant 128 : index
    %2 = vector.load %arg7[%c0_2, %c128] : memref<4x384xbf16, #tpu.memory_space<vmem>>, vector<4x128xbf16>
    tpu.vector_store %arg7[%c0_2, %c128], %1 {strides = array<i32>} : memref<4x384xbf16, #tpu.memory_space<vmem>>, vector<4x128xbf16>,
    %c0_i32 = arith.constant 0 : i32
    %3 = arith.cmpi eq, %arg1, %c0_i32 : i32
    %4 = arith.extui %3 : i1 to i32
    %c0_i32_3 = arith.constant 0 : i32
    %5 = arith.cmpi ne, %4, %c0_i32_3 : i32
    scf.if %5 {
      %cst_57 = arith.constant 0.000000e+00 : bf16
      %111 = vector.broadcast %cst_57 : bf16 to vector<4x128xbf16>
      %c0_58 = arith.constant 0 : index
      %c0_59 = arith.constant 0 : index
      %112 = vector.load %arg7[%c0_58, %c0_59] : memref<4x384xbf16, #tpu.memory_space<vmem>>, vector<4x128xbf16>
      tpu.vector_store %arg7[%c0_58, %c0_59], %111 {strides = array<i32>} : memref<4x384xbf16, #tpu.memory_space<vmem>>, vector<4x128xbf16>,
    } else {
    }
    %c0_i32_4 = arith.constant 0 : i32
    %6 = arith.cmpi sgt, %arg1, %c0_i32_4 : i32
    %7 = arith.extui %6 : i1 to i32
    %c0_i32_5 = arith.constant 0 : i32
    %8 = arith.cmpi ne, %7, %c0_i32_5 : i32
    scf.if %8 {
      %c0_57 = arith.constant 0 : index
      %c0_58 = arith.constant 0 : index
      %c0_59 = arith.constant 0 : index
      %111 = vector.load %arg2[%c0_57, %c0_58, %c0_59] : memref<1x4x128xbf16, #tpu.memory_space<vmem>>, vector<1x4x128xbf16>
      %112 = vector.shape_cast %111 : vector<1x4x128xbf16> to vector<4x128xbf16>
      %c0_60 = arith.constant 0 : index
      %c0_61 = arith.constant 0 : index
      %113 = vector.load %arg7[%c0_60, %c0_61] : memref<4x384xbf16, #tpu.memory_space<vmem>>, vector<4x128xbf16>
      tpu.vector_store %arg7[%c0_60, %c0_61], %112 {strides = array<i32>} : memref<4x384xbf16, #tpu.memory_space<vmem>>, vector<4x128xbf16>,
    } else {
    }
    %c1_i32 = arith.constant 1 : i32
    %9 = arith.cmpi eq, %arg1, %c1_i32 : i32
    %10 = arith.extui %9 : i1 to i32
    %c0_i32_6 = arith.constant 0 : i32
    %11 = arith.cmpi ne, %10, %c0_i32_6 : i32
    scf.if %11 {
      %cst_57 = arith.constant 0.000000e+00 : bf16
      %111 = vector.broadcast %cst_57 : bf16 to vector<4x128xbf16>
      %c0_58 = arith.constant 0 : index
      %c256 = arith.constant 256 : index
      %112 = vector.load %arg7[%c0_58, %c256] : memref<4x384xbf16, #tpu.memory_space<vmem>>, vector<4x128xbf16>
      tpu.vector_store %arg7[%c0_58, %c256], %111 {strides = array<i32>} : memref<4x384xbf16, #tpu.memory_space<vmem>>, vector<4x128xbf16>,
    } else {
    }
    %c1_i32_7 = arith.constant 1 : i32
    %12 = arith.cmpi slt, %arg1, %c1_i32_7 : i32
    %13 = arith.extui %12 : i1 to i32
    %c0_i32_8 = arith.constant 0 : i32
    %14 = arith.cmpi ne, %13, %c0_i32_8 : i32
    scf.if %14 {
      %c0_57 = arith.constant 0 : index
      %c0_58 = arith.constant 0 : index
      %c0_59 = arith.constant 0 : index
      %111 = vector.load %arg4[%c0_57, %c0_58, %c0_59] : memref<1x4x128xbf16, #tpu.memory_space<vmem>>, vector<1x4x128xbf16>
      %112 = vector.shape_cast %111 : vector<1x4x128xbf16> to vector<4x128xbf16>
      %c0_60 = arith.constant 0 : index
      %c256 = arith.constant 256 : index
      %113 = vector.load %arg7[%c0_60, %c256] : memref<4x384xbf16, #tpu.memory_space<vmem>>, vector<4x128xbf16>
      tpu.vector_store %arg7[%c0_60, %c256], %112 {strides = array<i32>} : memref<4x384xbf16, #tpu.memory_space<vmem>>, vector<4x128xbf16>,
    } else {
    }
    %c128_i32 = arith.constant 128 : i32
    %15 = arith.muli %arg1, %c128_i32 : i32
    %16 = tpu.iota {dimensions = array<i32: 1>} : vector<1x128xi32>
    %17 = vector.broadcast %15 : i32 to vector<1x128xi32>
    %18 = arith.addi %17, %16 : vector<1x128xi32>
    %c16_i32 = arith.constant 16 : i32
    %c0_i32_9 = arith.constant 0 : i32
    %19 = arith.cmpi eq, %c16_i32, %c0_i32_9 : i32
    %c1_i32_10 = arith.constant 1 : i32
    %20 = arith.select %19, %c1_i32_10, %c16_i32 : i32
    %21 = vector.broadcast %20 : i32 to vector<1x128xi32>
    %22 = arith.remsi %18, %21 : vector<1x128xi32>
    %c0_i32_11 = arith.constant 0 : i32
    %23 = vector.broadcast %c0_i32_11 : i32 to vector<1x128xi32>
    %24 = arith.cmpi ne, %22, %23 : vector<1x128xi32>
    %c0_i32_12 = arith.constant 0 : i32
    %25 = vector.broadcast %c0_i32_12 : i32 to vector<1x128xi32>
    %26 = arith.cmpi slt, %22, %25 : vector<1x128xi32>
    %c0_i32_13 = arith.constant 0 : i32
    %27 = arith.cmpi slt, %20, %c0_i32_13 : i32
    %28 = vector.broadcast %27 : i1 to vector<1x128xi1>
    %29 = vector.broadcast %28 : vector<1x128xi1> to vector<1x128xi1>
    %30 = arith.xori %26, %29 : vector<1x128xi1>
    %31 = arith.andi %30, %24 : vector<1x128xi1>
    %32 = vector.broadcast %20 : i32 to vector<1x128xi32>
    %33 = arith.addi %22, %32 : vector<1x128xi32>
    %34 = arith.select %31, %33, %22 : vector<1x128xi1>, vector<1x128xi32>
    %c-1_i32 = arith.constant -1 : i32
    %35 = vector.broadcast %c-1_i32 : i32 to vector<1x128xi32>
    %36 = arith.addi %34, %35 : vector<1x128xi32>
    %c0_i32_14 = arith.constant 0 : i32
    %37 = vector.broadcast %c0_i32_14 : i32 to vector<1x128xi32>
    %38 = arith.cmpi sge, %36, %37 : vector<1x128xi32>
    %c-1_i32_15 = arith.constant -1 : i32
    %39 = vector.broadcast %c-1_i32_15 : i32 to vector<1x128xi32>
    %40 = arith.addi %34, %39 : vector<1x128xi32>
    %c16_i32_16 = arith.constant 16 : i32
    %41 = vector.broadcast %c16_i32_16 : i32 to vector<1x128xi32>
    %42 = arith.cmpi slt, %40, %41 : vector<1x128xi32>
    %43 = arith.andi %38, %42 : vector<1x128xi1>
    %c1_i32_17 = arith.constant 1 : i32
    %44 = vector.broadcast %c1_i32_17 : i32 to vector<1x128xi32>
    %45 = arith.addi %34, %44 : vector<1x128xi32>
    %c0_i32_18 = arith.constant 0 : i32
    %46 = vector.broadcast %c0_i32_18 : i32 to vector<1x128xi32>
    %47 = arith.cmpi sge, %45, %46 : vector<1x128xi32>
    %c1_i32_19 = arith.constant 1 : i32
    %48 = vector.broadcast %c1_i32_19 : i32 to vector<1x128xi32>
    %49 = arith.addi %34, %48 : vector<1x128xi32>
    %c16_i32_20 = arith.constant 16 : i32
    %50 = vector.broadcast %c16_i32_20 : i32 to vector<1x128xi32>
    %51 = arith.cmpi slt, %49, %50 : vector<1x128xi32>
    %52 = arith.andi %47, %51 : vector<1x128xi1>
    %cst = arith.constant 0.000000e+00 : bf16
    %53 = vector.broadcast %cst : bf16 to vector<12x128xbf16>
    %c0_21 = arith.constant 0 : index
    %c111 = arith.constant 111 : index
    %54 = vector.load %arg7[%c0_21, %c111] : memref<4x384xbf16, #tpu.memory_space<vmem>>, vector<4x128xbf16>
    %cst_22 = arith.constant 0.000000e+00 : bf16
    %55 = vector.broadcast %cst_22 : bf16 to vector<4x128xbf16>
    %56 = vector.shape_cast %43 : vector<1x128xi1> to vector<1x128xi1>
    %57 = vector.broadcast %56 : vector<1x128xi1> to vector<4x128xi1>
    %58 = arith.select %57, %54, %55 : vector<4x128xi1>, vector<4x128xbf16>
    %59 = tpu.concatenate %58, %53 in 0 : vector<4x128xbf16>, vector<12x128xbf16> -> vector<16x128xbf16>
    %c0_23 = arith.constant 0 : index
    %c0_24 = arith.constant 0 : index
    %60 = vector.load %arg8[%c0_23, %c0_24] : memref<144x128xbf16, #tpu.memory_space<vmem>>, vector<16x128xbf16>
    tpu.vector_store %arg8[%c0_23, %c0_24], %59 {strides = array<i32>} : memref<144x128xbf16, #tpu.memory_space<vmem>>, vector<16x128xbf16>,
    %c0_25 = arith.constant 0 : index
    %c112 = arith.constant 112 : index
    %61 = vector.load %arg7[%c0_25, %c112] : memref<4x384xbf16, #tpu.memory_space<vmem>>, vector<4x128xbf16>
    %62 = tpu.concatenate %61, %53 in 0 : vector<4x128xbf16>, vector<12x128xbf16> -> vector<16x128xbf16>
    %c16 = arith.constant 16 : index
    %c0_26 = arith.constant 0 : index
    %63 = vector.load %arg8[%c16, %c0_26] : memref<144x128xbf16, #tpu.memory_space<vmem>>, vector<16x128xbf16>
    tpu.vector_store %arg8[%c16, %c0_26], %62 {strides = array<i32>} : memref<144x128xbf16, #tpu.memory_space<vmem>>, vector<16x128xbf16>,
    %c0_27 = arith.constant 0 : index
    %c113 = arith.constant 113 : index
    %64 = vector.load %arg7[%c0_27, %c113] : memref<4x384xbf16, #tpu.memory_space<vmem>>, vector<4x128xbf16>
    %cst_28 = arith.constant 0.000000e+00 : bf16
    %65 = vector.broadcast %cst_28 : bf16 to vector<4x128xbf16>
    %66 = vector.shape_cast %52 : vector<1x128xi1> to vector<1x128xi1>
    %67 = vector.broadcast %66 : vector<1x128xi1> to vector<4x128xi1>
    %68 = arith.select %67, %64, %65 : vector<4x128xi1>, vector<4x128xbf16>
    %69 = tpu.concatenate %68, %53 in 0 : vector<4x128xbf16>, vector<12x128xbf16> -> vector<16x128xbf16>
    %c32 = arith.constant 32 : index
    %c0_29 = arith.constant 0 : index
    %70 = vector.load %arg8[%c32, %c0_29] : memref<144x128xbf16, #tpu.memory_space<vmem>>, vector<16x128xbf16>
    tpu.vector_store %arg8[%c32, %c0_29], %69 {strides = array<i32>} : memref<144x128xbf16, #tpu.memory_space<vmem>>, vector<16x128xbf16>,
    %c0_30 = arith.constant 0 : index
    %c127 = arith.constant 127 : index
    %71 = vector.load %arg7[%c0_30, %c127] : memref<4x384xbf16, #tpu.memory_space<vmem>>, vector<4x128xbf16>
    %cst_31 = arith.constant 0.000000e+00 : bf16
    %72 = vector.broadcast %cst_31 : bf16 to vector<4x128xbf16>
    %73 = vector.shape_cast %43 : vector<1x128xi1> to vector<1x128xi1>
    %74 = vector.broadcast %73 : vector<1x128xi1> to vector<4x128xi1>
    %75 = arith.select %74, %71, %72 : vector<4x128xi1>, vector<4x128xbf16>
    %76 = tpu.concatenate %75, %53 in 0 : vector<4x128xbf16>, vector<12x128xbf16> -> vector<16x128xbf16>
    %c48 = arith.constant 48 : index
    %c0_32 = arith.constant 0 : index
    %77 = vector.load %arg8[%c48, %c0_32] : memref<144x128xbf16, #tpu.memory_space<vmem>>, vector<16x128xbf16>
    tpu.vector_store %arg8[%c48, %c0_32], %76 {strides = array<i32>} : memref<144x128xbf16, #tpu.memory_space<vmem>>, vector<16x128xbf16>,
    %c0_33 = arith.constant 0 : index
    %c128_34 = arith.constant 128 : index
    %78 = vector.load %arg7[%c0_33, %c128_34] : memref<4x384xbf16, #tpu.memory_space<vmem>>, vector<4x128xbf16>
    %79 = tpu.concatenate %78, %53 in 0 : vector<4x128xbf16>, vector<12x128xbf16> -> vector<16x128xbf16>
    %c64 = arith.constant 64 : index
    %c0_35 = arith.constant 0 : index
    %80 = vector.load %arg8[%c64, %c0_35] : memref<144x128xbf16, #tpu.memory_space<vmem>>, vector<16x128xbf16>
    tpu.vector_store %arg8[%c64, %c0_35], %79 {strides = array<i32>} : memref<144x128xbf16, #tpu.memory_space<vmem>>, vector<16x128xbf16>,
    %c0_36 = arith.constant 0 : index
    %c129 = arith.constant 129 : index
    %81 = vector.load %arg7[%c0_36, %c129] : memref<4x384xbf16, #tpu.memory_space<vmem>>, vector<4x128xbf16>
    %cst_37 = arith.constant 0.000000e+00 : bf16
    %82 = vector.broadcast %cst_37 : bf16 to vector<4x128xbf16>
    %83 = vector.shape_cast %52 : vector<1x128xi1> to vector<1x128xi1>
    %84 = vector.broadcast %83 : vector<1x128xi1> to vector<4x128xi1>
    %85 = arith.select %84, %81, %82 : vector<4x128xi1>, vector<4x128xbf16>
    %86 = tpu.concatenate %85, %53 in 0 : vector<4x128xbf16>, vector<12x128xbf16> -> vector<16x128xbf16>
    %c80 = arith.constant 80 : index
    %c0_38 = arith.constant 0 : index
    %87 = vector.load %arg8[%c80, %c0_38] : memref<144x128xbf16, #tpu.memory_space<vmem>>, vector<16x128xbf16>
    tpu.vector_store %arg8[%c80, %c0_38], %86 {strides = array<i32>} : memref<144x128xbf16, #tpu.memory_space<vmem>>, vector<16x128xbf16>,
    %c0_39 = arith.constant 0 : index
    %c143 = arith.constant 143 : index
    %88 = vector.load %arg7[%c0_39, %c143] : memref<4x384xbf16, #tpu.memory_space<vmem>>, vector<4x128xbf16>
    %cst_40 = arith.constant 0.000000e+00 : bf16
    %89 = vector.broadcast %cst_40 : bf16 to vector<4x128xbf16>
    %90 = vector.shape_cast %43 : vector<1x128xi1> to vector<1x128xi1>
    %91 = vector.broadcast %90 : vector<1x128xi1> to vector<4x128xi1>
    %92 = arith.select %91, %88, %89 : vector<4x128xi1>, vector<4x128xbf16>
    %93 = tpu.concatenate %92, %53 in 0 : vector<4x128xbf16>, vector<12x128xbf16> -> vector<16x128xbf16>
    %c96 = arith.constant 96 : index
    %c0_41 = arith.constant 0 : index
    %94 = vector.load %arg8[%c96, %c0_41] : memref<144x128xbf16, #tpu.memory_space<vmem>>, vector<16x128xbf16>
    tpu.vector_store %arg8[%c96, %c0_41], %93 {strides = array<i32>} : memref<144x128xbf16, #tpu.memory_space<vmem>>, vector<16x128xbf16>,
    %c0_42 = arith.constant 0 : index
    %c144 = arith.constant 144 : index
    %95 = vector.load %arg7[%c0_42, %c144] : memref<4x384xbf16, #tpu.memory_space<vmem>>, vector<4x128xbf16>
    %96 = tpu.concatenate %95, %53 in 0 : vector<4x128xbf16>, vector<12x128xbf16> -> vector<16x128xbf16>
    %c112_43 = arith.constant 112 : index
    %c0_44 = arith.constant 0 : index
    %97 = vector.load %arg8[%c112_43, %c0_44] : memref<144x128xbf16, #tpu.memory_space<vmem>>, vector<16x128xbf16>
    tpu.vector_store %arg8[%c112_43, %c0_44], %96 {strides = array<i32>} : memref<144x128xbf16, #tpu.memory_space<vmem>>, vector<16x128xbf16>,
    %c0_45 = arith.constant 0 : index
    %c145 = arith.constant 145 : index
    %98 = vector.load %arg7[%c0_45, %c145] : memref<4x384xbf16, #tpu.memory_space<vmem>>, vector<4x128xbf16>
    %cst_46 = arith.constant 0.000000e+00 : bf16
    %99 = vector.broadcast %cst_46 : bf16 to vector<4x128xbf16>
    %100 = vector.shape_cast %52 : vector<1x128xi1> to vector<1x128xi1>
    %101 = vector.broadcast %100 : vector<1x128xi1> to vector<4x128xi1>
    %102 = arith.select %101, %98, %99 : vector<4x128xi1>, vector<4x128xbf16>
    %103 = tpu.concatenate %102, %53 in 0 : vector<4x128xbf16>, vector<12x128xbf16> -> vector<16x128xbf16>
    %c128_47 = arith.constant 128 : index
    %c0_48 = arith.constant 0 : index
    %104 = vector.load %arg8[%c128_47, %c0_48] : memref<144x128xbf16, #tpu.memory_space<vmem>>, vector<16x128xbf16>
    tpu.vector_store %arg8[%c128_47, %c0_48], %103 {strides = array<i32>} : memref<144x128xbf16, #tpu.memory_space<vmem>>, vector<16x128xbf16>,
    %c0_49 = arith.constant 0 : index
    %c0_50 = arith.constant 0 : index
    %105 = vector.load %arg5[%c0_49, %c0_50] : memref<4x144xbf16, #tpu.memory_space<vmem>>, vector<4x144xbf16>
    %c0_51 = arith.constant 0 : index
    %c0_52 = arith.constant 0 : index
    %106 = vector.load %arg8[%c0_51, %c0_52] : memref<144x128xbf16, #tpu.memory_space<vmem>>, vector<144x128xbf16>
    %cst_53 = arith.constant dense<0.000000e+00> : vector<4x128xf32>
    %107 = tpu.matmul %105, %106, %cst_53 {dimension_numbers = #tpu.dot_dimension_numbers<[1], [0], [0], [1], [0, 0, 1, 1], [], []>} : vector<4x144xbf16>, vector<144x128xbf16>, vector<4x128xf32> -> vector<4x128xf32>
    %c0_54 = arith.constant 0 : index
    %c0_55 = arith.constant 0 : index
    %c0_56 = arith.constant 0 : index
    %108 = vector.load %arg6[%c0_54, %c0_55, %c0_56] : memref<1x4x128xf32, #tpu.memory_space<vmem>>, vector<1x4x128xf32>
    %109 = vector.shape_cast %108 : vector<1x4x128xf32> to vector<4x128xf32>
    %110 = vector.shape_cast %107 : vector<4x128xf32> to vector<1x4x128xf32>
    tpu.vector_store %arg6[%c0_54, %c0_55, %c0_56], %110 {strides = array<i32>} : memref<1x4x128xf32, #tpu.memory_space<vmem>>, vector<1x4x128xf32>,
    return
  }
  func.func @transform_0(%arg0: i32, %arg1: i32) -> (i32, i32, i32) {
    %c1_i32 = arith.constant 1 : i32
    %0 = arith.muli %arg1, %c1_i32 : i32
    %c1_i32_0 = arith.constant 1 : i32
    %1 = arith.subi %0, %c1_i32_0 : i32
    %c0_i32 = arith.constant 0 : i32
    %2 = arith.maxsi %1, %c0_i32 : i32
    %c0_i32_1 = arith.constant 0 : i32
    %c0_i32_2 = arith.constant 0 : i32
    return %arg0, %c0_i32_1, %2 : i32, i32, i32
  }
  func.func @transform_1(%arg0: i32, %arg1: i32) -> (i32, i32, i32) {
    %c0_i32 = arith.constant 0 : i32
    %c0_i32_0 = arith.constant 0 : i32
    return %arg0, %c0_i32, %arg1 : i32, i32, i32
  }
  func.func @transform_2(%arg0: i32, %arg1: i32) -> (i32, i32, i32) {
    %c1_i32 = arith.constant 1 : i32
    %0 = arith.muli %arg1, %c1_i32 : i32
    %c1_i32_0 = arith.constant 1 : i32
    %1 = arith.addi %0, %c1_i32_0 : i32
    %c1_i32_1 = arith.constant 1 : i32
    %2 = arith.minsi %1, %c1_i32_1 : i32
    %c0_i32 = arith.constant 0 : i32
    %c0_i32_2 = arith.constant 0 : i32
    return %arg0, %c0_i32, %2 : i32, i32, i32
  }
  func.func @transform_3(%arg0: i32, %arg1: i32) -> (i32, i32) {
    %c0_i32 = arith.constant 0 : i32
    %c0_i32_0 = arith.constant 0 : i32
    %c0_i32_1 = arith.constant 0 : i32
    return %c0_i32, %c0_i32_0 : i32, i32
  }
  func.func @transform_4(%arg0: i32, %arg1: i32) -> (i32, i32, i32) {
    %c0_i32 = arith.constant 0 : i32
    %c0_i32_0 = arith.constant 0 : i32
    return %arg0, %c0_i32, %arg1 : i32, i32, i32
  }
}

</mosaic_0001>

<llo_original>
// kernel: adaptor_conv.1
$region0: #{adaptor_conv.1}
  #allocation0 [shape = 'u32[]', space=smem, size = 0x4, offset = 0x4, fixed_abs, tag = 'smem constant byte address 0x4 - core index']
  #allocation1 [shape = 'u32[144,128]{1,0:T(1,128)}', space=vmem, size = 0x12000, scoped, tag = 'internal scratch']
  #allocation2 [shape = 'bf16[4,384]{1,0:T(4,128)(2,1)}', space=vmem, size = 0xc00, scoped, tag = 'scratch operand']
  #allocation3 [shape = 'bf16[144,128]{1,0:T(16,128)(2,1)}', space=vmem, size = 0x9000, scoped, tag = 'scratch operand']
  %s0 = inlined_call_operand.vmem [shape: bf16[2,4,256], index: 0, kind: input, shape index: {}, may-alias: {0,1,2}]
  %s1 = inlined_call_operand.vmem [shape: bf16[2,4,256], index: 1, kind: input, shape index: {}, may-alias: {0,1,2}]
  %s2 = inlined_call_operand.vmem [shape: bf16[2,4,256], index: 2, kind: input, shape index: {}, may-alias: {0,1,2}]
  %s3 = inlined_call_operand.vmem [shape: bf16[4,144], index: 3, kind: input, shape index: {}]
  %s4 = inlined_call_operand.vmem [shape: f32[2,4,256], index: 4, kind: output, shape index: {}]
  %s5 = sld [smem:[#allocation0]]
  $region65: #{adaptor_conv.1} parent=0
    _
  %s7 = ssub.s32 1, %s5
  %s8 = scalar_select 0, %s7, %s5
  loop: start=0, step=1, limit=6
  $region2: #{adaptor_conv.1} parent=0 // loop_pre_header
    _
  $region3: #{adaptor_conv.1} parent=0 // loop_header
    %s10 = sphi 0, %s14
    %p11 = scmp.ge.s32.totalorder %s10, 6
    %s17 = sphi 0, %s29
    %s18 = sphi 0, %s25
    %s19 = sphi 0, %s17
    %s20 = sphi 0, %s18
    %s21 = sphi 0, %s19
    %s22 = sphi 0, %s20
    %s40 = sphi 0, %s42
    %s43 = sphi 0, %s40
    %s44 = sphi 0, %s43
    %s60 = sphi 0, %s44
    %s68 = sphi 0, %s70
    %s71 = sphi 0, %s68
    %s72 = sphi 0, %s71
    %s88 = sphi 0, %s72
    %s102 = sphi 0, %s104
    %s105 = sphi 0, %s102
    %s106 = sphi 0, %s105
    %s122 = sphi 0, %s106
    %s126 = sphi 0, %s126
    %s128 = sphi 0, %s126
    %s129 = sphi 0, %s128
    %s143 = sphi 0, %s129
    %s151 = sphi 0, %s153
    %s154 = sphi 0, %s151
    %s155 = sphi 0, %s154
    %s171 = sphi 0, %s155
  $region4: #{adaptor_conv.1} parent=0 // loop_header_branch
    %13 = sbr.rel (%p11) target = $region8
  $region5: #{adaptor_conv.1} parent=0 // loop_body
    %s15 = ssub.s32 %s10, 1
    %s16 = ssub.s32 %s10, 2
    %s23 = sadd.s32 1, %s18
    %p24 = scmp.ge.s32.totalorder %s23, 2
    %s25 = scalar_select %p24, 0, %s23
    %s26 = sadd.s32 1, %s17
    %s27 = scalar_select %p24, %s26, %s17
    %p28 = scmp.ge.s32.totalorder %s27, 2
    %s29 = scalar_select %p28, 0, %s27
    %s30 = ssub.s32 %s18, 1
    %p31 = scmp.gt.s32.totalorder %s30, 0
    %s32 = scalar_select %p31, %s30, 0
    %s33 = ssub.s32 %s25, 1
    %p34 = scmp.gt.s32.totalorder %s33, 0
    %s35 = scalar_select %p34, %s33, 0
    %s36 = ssub.s32 %s17, %s29
    %s37 = ssub.s32 %s32, %s35
    %s38 = sor.u32 %s36, %s37
    %p39 = scmp.eq.s32.totalorder %s38, 0
    %s41 = sadd.s32 %s40, 1
    %s42 = scalar_select %p39, %s40, %s41
    %p45 = pneg %p39
    %p46 = scmp.eq.s32.totalorder %s10, 3
    %p47 = por %p45, %p46
    %p48 = scmp.ne.s32.totalorder %s40, %s43
    %p49 = scmp.eq.s32.totalorder %s10, 0
    %p50 = por %p48, %p49
    %p51 = scmp.ne.s32.totalorder %s40, %s43
    %p52 = scmp.eq.s32.totalorder %s15, 3
    %p53 = por %p51, %p52
    %p54 = scmp.ne.s32.totalorder %s43, %s44
    %p55 = scmp.eq.s32.totalorder %s15, 0
    %p56 = por %p54, %p55
    %p57 = scmp.ne.s32.totalorder %s43, %s44
    %p58 = scmp.eq.s32.totalorder %s16, 3
    %p59 = por %p57, %p58
    %p61 = scmp.ne.s32.totalorder %s44, %s60
    %p62 = scmp.eq.s32.totalorder %s16, 0
    %p63 = por %p61, %p62
    %s64 = ssub.s32 %s17, %s29
    %s65 = ssub.s32 %s18, %s25
    %s66 = sor.u32 %s64, %s65
    %p67 = scmp.eq.s32.totalorder %s66, 0
    %s69 = sadd.s32 %s68, 1
    %s70 = scalar_select %p67, %s68, %s69
    %p73 = pneg %p67
    %p74 = scmp.eq.s32.totalorder %s10, 3
    %p75 = por %p73, %p74
    %p76 = scmp.ne.s32.totalorder %s68, %s71
    %p77 = scmp.eq.s32.totalorder %s10, 0
    %p78 = por %p76, %p77
    %p79 = scmp.ne.s32.totalorder %s68, %s71
    %p80 = scmp.eq.s32.totalorder %s15, 3
    %p81 = por %p79, %p80
    %p82 = scmp.ne.s32.totalorder %s71, %s72
    %p83 = scmp.eq.s32.totalorder %s15, 0
    %p84 = por %p82, %p83
    %p85 = scmp.ne.s32.totalorder %s71, %s72
    %p86 = scmp.eq.s32.totalorder %s16, 3
    %p87 = por %p85, %p86
    %p89 = scmp.ne.s32.totalorder %s72, %s88
    %p90 = scmp.eq.s32.totalorder %s16, 0
    %p91 = por %p89, %p90
    %s92 = sadd.s32 %s18, 1
    %p93 = scmp.lt.s32.totalorder %s92, 1
    %s94 = scalar_select %p93, %s92, 1
    %s95 = sadd.s32 %s25, 1
    %p96 = scmp.lt.s32.totalorder %s95, 1
    %s97 = scalar_select %p96, %s95, 1
    %s98 = ssub.s32 %s17, %s29
    %s99 = ssub.s32 %s94, %s97
    %s100 = sor.u32 %s98, %s99
    %p101 = scmp.eq.s32.totalorder %s100, 0
    %s103 = sadd.s32 %s102, 1
    %s104 = scalar_select %p101, %s102, %s103
    %p107 = pneg %p101
    %p108 = scmp.eq.s32.totalorder %s10, 3
    %p109 = por %p107, %p108
    %p110 = scmp.ne.s32.totalorder %s102, %s105
    %p111 = scmp.eq.s32.totalorder %s10, 0
    %p112 = por %p110, %p111
    %p113 = scmp.ne.s32.totalorder %s102, %s105
    %p114 = scmp.eq.s32.totalorder %s15, 3
    %p115 = por %p113, %p114
    %p116 = scmp.ne.s32.totalorder %s105, %s106
    %p117 = scmp.eq.s32.totalorder %s15, 0
    %p118 = por %p116, %p117
    %p119 = scmp.ne.s32.totalorder %s105, %s106
    %p120 = scmp.eq.s32.totalorder %s16, 3
    %p121 = por %p119, %p120
    %p123 = scmp.ne.s32.totalorder %s106, %s122
    %p124 = scmp.eq.s32.totalorder %s16, 0
    %p125 = por %p123, %p124
    %s127 = sadd.s32 %s126, 1
    %p130 = scmp.eq.s32.totalorder %s10, 3
    %p131 = scmp.ne.s32.totalorder %s126, %s128
    %p132 = scmp.eq.s32.totalorder %s10, 0
    %p133 = por %p131, %p132
    %p134 = scmp.ne.s32.totalorder %s126, %s128
    %p135 = scmp.eq.s32.totalorder %s15, 3
    %p136 = por %p134, %p135
    %p137 = scmp.ne.s32.totalorder %s128, %s129
    %p138 = scmp.eq.s32.totalorder %s15, 0
    %p139 = por %p137, %p138
    %p140 = scmp.ne.s32.totalorder %s128, %s129
    %p141 = scmp.eq.s32.totalorder %s16, 3
    %p142 = por %p140, %p141
    %p144 = scmp.ne.s32.totalorder %s129, %s143
    %p145 = scmp.eq.s32.totalorder %s16, 0
    %p146 = por %p144, %p145
    %s147 = ssub.s32 %s17, %s29
    %s148 = ssub.s32 %s18, %s25
    %s149 = sor.u32 %s147, %s148
    %p150 = scmp.eq.s32.totalorder %s149, 0
    %s152 = sadd.s32 %s151, 1
    %s153 = scalar_select %p150, %s151, %s152
    %p156 = pneg %p150
    %p157 = scmp.eq.s32.totalorder %s10, 3
    %p158 = por %p156, %p157
    %p159 = scmp.ne.s32.totalorder %s151, %s154
    %p160 = scmp.eq.s32.totalorder %s10, 0
    %p161 = por %p159, %p160
    %p162 = scmp.ne.s32.totalorder %s151, %s154
    %p163 = scmp.eq.s32.totalorder %s15, 3
    %p164 = por %p162, %p163
    %p165 = scmp.ne.s32.totalorder %s154, %s155
    %p166 = scmp.eq.s32.totalorder %s15, 0
    %p167 = por %p165, %p166
    %p168 = scmp.ne.s32.totalorder %s154, %s155
    %p169 = scmp.eq.s32.totalorder %s16, 3
    %p170 = por %p168, %p169
    %p172 = scmp.ne.s32.totalorder %s155, %s171
    %p173 = scmp.eq.s32.totalorder %s16, 0
    %p174 = por %p172, %p173
    %p175 = scmp.le.s32.totalorder 1, %s10
    %p176 = scmp.lt.s32.totalorder %s10, 5
    %p177 = pnand %p175, %p176
    %p178 = pneg %p177
    // Predicated region
    $region9: #{adaptor_conv.1} parent=5 // pred_check
      _
    $region10: #{adaptor_conv.1} parent=5 // pred_check_branch
      %180 = sbr.rel (%p177) target = $region12
    $region11: #{adaptor_conv.1} parent=5 // pred_region
      %s181 = ssub.s32 %s10, 1
      // Predicated region
      $region13: #{adaptor_conv.1} parent=11 // pred_check
        %p182 = pneg %p139
      $region14: #{adaptor_conv.1} parent=11 // pred_check_branch
        %184 = sbr.rel (%p182) target = $region16
      $region15: #{adaptor_conv.1} parent=11 // pred_region
        _
      $region16: #{adaptor_conv.1} parent=11 // pred_fallthru
        _
    $region12: #{adaptor_conv.1} parent=5 // pred_fallthru
      _
    %p185 = scmp.lt.s32.totalorder %s10, 4
    // Predicated region
    $region17: #{adaptor_conv.1} parent=5 // pred_check
      %p186 = pneg %p185
    $region18: #{adaptor_conv.1} parent=5 // pred_check_branch
      %188 = sbr.rel (%p186) target = $region20
    $region19: #{adaptor_conv.1} parent=5 // pred_region
      // Predicated region
      $region21: #{adaptor_conv.1} parent=19 // pred_check
        %p189 = pneg %p50
      $region22: #{adaptor_conv.1} parent=19 // pred_check_branch
        %191 = sbr.rel (%p189) target = $region24
      $region23: #{adaptor_conv.1} parent=19 // pred_region
        %s192 = ssub.s32 %s18, 1
        %p193 = scmp.gt.s32.totalorder %s192, 0
        %s194 = scalar_select %p193, %s192, 0
        %p195 = scmp.lt.s32.totalorder %s17, 1
        %s196 = scalar_select %p195, %s17, 1
        %p197 = scmp.lt.s32.totalorder %s194, 1
        %s198 = scalar_select %p197, %s194, 1
        %s199 = smul.addr %s196, 2
        %s200 = sadd.s32 %s198, %s199
        %s201 = smul.addr %s200, 2
        %s202 = scalar_lea.vmem %s0, %s201
        %s203 = ssub.s32 %s18, 1
        %p204 = scmp.gt.s32.totalorder %s203, 0
        %s205 = scalar_select %p204, %s203, 0
      $region24: #{adaptor_conv.1} parent=19 // pred_fallthru
        _
      // Predicated region
      $region25: #{adaptor_conv.1} parent=19 // pred_check
        %p206 = pneg %p78
      $region26: #{adaptor_conv.1} parent=19 // pred_check_branch
        %208 = sbr.rel (%p206) target = $region28
      $region27: #{adaptor_conv.1} parent=19 // pred_region
        %p209 = scmp.lt.s32.totalorder %s17, 1
        %s210 = scalar_select %p209, %s17, 1
        %p211 = scmp.lt.s32.totalorder %s18, 1
        %s212 = scalar_select %p211, %s18, 1
        %s213 = smul.addr %s210, 2
        %s214 = sadd.s32 %s212, %s213
        %s215 = smul.addr %s214, 2
        %s216 = scalar_lea.vmem %s1, %s215
      $region28: #{adaptor_conv.1} parent=19 // pred_fallthru
        _
      // Predicated region
      $region29: #{adaptor_conv.1} parent=19 // pred_check
        %p217 = pneg %p112
      $region30: #{adaptor_conv.1} parent=19 // pred_check_branch
        %219 = sbr.rel (%p217) target = $region32
      $region31: #{adaptor_conv.1} parent=19 // pred_region
        %s220 = sadd.s32 %s18, 1
        %p221 = scmp.lt.s32.totalorder %s220, 1
        %s222 = scalar_select %p221, %s220, 1
        %p223 = scmp.lt.s32.totalorder %s17, 1
        %s224 = scalar_select %p223, %s17, 1
        %p225 = scmp.lt.s32.totalorder %s222, 1
        %s226 = scalar_select %p225, %s222, 1
        %s227 = smul.addr %s224, 2
        %s228 = sadd.s32 %s226, %s227
        %s229 = smul.addr %s228, 2
        %s230 = scalar_lea.vmem %s2, %s229
        %s231 = sadd.s32 %s18, 1
        %p232 = scmp.lt.s32.totalorder %s231, 1
        %s233 = scalar_select %p232, %s231, 1
      $region32: #{adaptor_conv.1} parent=19 // pred_fallthru
        _
    $region20: #{adaptor_conv.1} parent=5 // pred_fallthru
      _
    %p234 = scmp.le.s32.totalorder 1, %s10
    %p235 = scmp.lt.s32.totalorder %s10, 5
    %p236 = pnand %p234, %p235
    %p237 = pneg %p236
    // Predicated region
    $region33: #{adaptor_conv.1} parent=5 // pred_check
      _
    $region34: #{adaptor_conv.1} parent=5 // pred_check_branch
      %239 = sbr.rel (%p236) target = $region36
    $region35: #{adaptor_conv.1} parent=5 // pred_region
      %s240 = ssub.s32 %s10, 1
      %s241 = ssub.s32 %s20, 1
      %p242 = scmp.gt.s32.totalorder %s241, 0
      %s243 = scalar_select %p242, %s241, 0
      %p244 = scmp.lt.s32.totalorder %s19, 1
      %s245 = scalar_select %p244, %s19, 1
      %p246 = scmp.lt.s32.totalorder %s243, 1
      %s247 = scalar_select %p246, %s243, 1
      %s248 = smul.addr %s245, 2
      %s249 = sadd.s32 %s247, %s248
      %s250 = smul.addr %s249, 2
      %s251 = scalar_lea.vmem %s0, %s250
      %p252 = pneg %p56
      %p253 = pneg %p53
      %p254 = scmp.lt.s32.totalorder %s19, 1
      %s255 = scalar_select %p254, %s19, 1
      %p256 = scmp.lt.s32.totalorder %s20, 1
      %s257 = scalar_select %p256, %s20, 1
      %s258 = smul.addr %s255, 2
      %s259 = sadd.s32 %s257, %s258
      %s260 = smul.addr %s259, 2
      %s261 = scalar_lea.vmem %s1, %s260
      %p262 = pneg %p84
      %p263 = pneg %p81
      %s264 = sadd.s32 %s20, 1
      %p265 = scmp.lt.s32.totalorder %s264, 1
      %s266 = scalar_select %p265, %s264, 1
      %p267 = scmp.lt.s32.totalorder %s19, 1
      %s268 = scalar_select %p267, %s19, 1
      %p269 = scmp.lt.s32.totalorder %s266, 1
      %s270 = scalar_select %p269, %s266, 1
      %s271 = smul.addr %s268, 2
      %s272 = sadd.s32 %s270, %s271
      %s273 = smul.addr %s272, 2
      %s274 = scalar_lea.vmem %s2, %s273
      %p275 = pneg %p118
      %p276 = pneg %p115
      %p277 = pneg %p139
      %p278 = pneg %p136
      %p279 = pneg %p167
      %p280 = pneg %p164
      %p281 = scmp.lt.s32.totalorder %s19, 1
      %s282 = scalar_select %p281, %s19, 1
      %p283 = scmp.lt.s32.totalorder %s20, 1
      %s284 = scalar_select %p283, %s20, 1
      %s285 = smul.addr %s282, 2
      %s286 = sadd.s32 %s284, %s285
      %s287 = smul.addr %s286, 4
      %s288 = scalar_lea.vmem %s4, %s287
      %s289 = ssub.s32 %s20, 1
      %p290 = scmp.gt.s32.totalorder %s289, 0
      %s291 = scalar_select %p290, %s289, 0
      %p292 = scmp.lt.s32.totalorder %s19, 1
      %s293 = scalar_select %p292, %s19, 1
      %p294 = scmp.lt.s32.totalorder %s291, 1
      %s295 = scalar_select %p294, %s291, 1
      %s296 = smul.addr %s293, 2
      %s297 = sadd.s32 %s295, %s296
      %s298 = smul.addr %s297, 2
      %s299 = scalar_lea.vmem %s0, %s298
      %s300 = ssub.s32 %s20, 1
      %p301 = scmp.gt.s32.totalorder %s300, 0
      %s302 = scalar_select %p301, %s300, 0
      %p303 = scmp.lt.s32.totalorder %s19, 1
      %s304 = scalar_select %p303, %s19, 1
      %p305 = scmp.lt.s32.totalorder %s20, 1
      %s306 = scalar_select %p305, %s20, 1
      %s307 = smul.addr %s304, 2
      %s308 = sadd.s32 %s306, %s307
      %s309 = smul.addr %s308, 2
      %s310 = scalar_lea.vmem %s1, %s309
      %s311 = sadd.s32 %s20, 1
      %p312 = scmp.lt.s32.totalorder %s311, 1
      %s313 = scalar_select %p312, %s311, 1
      %p314 = scmp.lt.s32.totalorder %s19, 1
      %s315 = scalar_select %p314, %s19, 1
      %p316 = scmp.lt.s32.totalorder %s313, 1
      %s317 = scalar_select %p316, %s313, 1
      %s318 = smul.addr %s315, 2
      %s319 = sadd.s32 %s317, %s318
      %s320 = smul.addr %s319, 2
      %s321 = scalar_lea.vmem %s2, %s320
      %s322 = sadd.s32 %s20, 1
      %p323 = scmp.lt.s32.totalorder %s322, 1
      %s324 = scalar_select %p323, %s322, 1
      %p325 = scmp.lt.s32.totalorder %s19, 1
      %s326 = scalar_select %p325, %s19, 1
      %p327 = scmp.lt.s32.totalorder %s20, 1
      %s328 = scalar_select %p327, %s20, 1
      %s329 = smul.addr %s326, 2
      %s330 = sadd.s32 %s328, %s329
      %s331 = smul.addr %s330, 4
      %s332 = scalar_lea.vmem %s4, %s331
      %v336 = vld [vmem:[%s310] sm:$0x3]
      %337 = vst [vmem:[#allocation2 + $0x2] sm:$0x3] %v336
      %p338 = scmp.eq.s32.totalorder %s20, 0
      // Predicated region
      $region37: #{adaptor_conv.1} parent=35 // pred_check
        %p339 = pneg %p338
      $region38: #{adaptor_conv.1} parent=35 // pred_check_branch
        %341 = sbr.rel (%p339) target = $region40
      $region39: #{adaptor_conv.1} parent=35 // pred_region
        %342 = vst [vmem:[#allocation2] sm:$0x3] 0
      $region40: #{adaptor_conv.1} parent=35 // pred_fallthru
        _
      %p343 = scmp.gt.s32.totalorder %s20, 0
      // Predicated region
      $region41: #{adaptor_conv.1} parent=35 // pred_check
        %p344 = pneg %p343
      $region42: #{adaptor_conv.1} parent=35 // pred_check_branch
        %346 = sbr.rel (%p344) target = $region44
      $region43: #{adaptor_conv.1} parent=35 // pred_region
        %v347 = vld [vmem:[%s299] sm:$0x3]
        %348 = vst [vmem:[#allocation2] sm:$0x3] %v347
      $region44: #{adaptor_conv.1} parent=35 // pred_fallthru
        _
      %p349 = scmp.eq.s32.totalorder %s20, 1
      // Predicated region
      $region45: #{adaptor_conv.1} parent=35 // pred_check
        %p350 = pneg %p349
      $region46: #{adaptor_conv.1} parent=35 // pred_check_branch
        %352 = sbr.rel (%p350) target = $region48
      $region47: #{adaptor_conv.1} parent=35 // pred_region
        %353 = vst [vmem:[#allocation2 + $0x4] sm:$0x3] 0
      $region48: #{adaptor_conv.1} parent=35 // pred_fallthru
        _
      %p354 = scmp.lt.s32.totalorder %s20, 1
      // Predicated region
      $region49: #{adaptor_conv.1} parent=35 // pred_check
        %p355 = pneg %p354
      $region50: #{adaptor_conv.1} parent=35 // pred_check_branch
        %357 = sbr.rel (%p355) target = $region52
      $region51: #{adaptor_conv.1} parent=35 // pred_region
        %v358 = vld [vmem:[%s321] sm:$0x3]
        %359 = vst [vmem:[#allocation2 + $0x4] sm:$0x3] %v358
      $region52: #{adaptor_conv.1} parent=35 // pred_fallthru
        _
      %s360 = smul.u32 %s20, 128
      %v361 = vlaneseq
      %v362 = vand.u32 %v361, 127
      %v363 = vstv %s360
      %v364 = vadd.s32 %v363, %v362
      %vm365 = vcmp.lt.s32.totalorder %v364, 0
      %v366 = vsub.s32 0, %v364
      %v367 = vsel %vm365, %v366, %v364
      %v368 = vshrl.u32 %v367, 4
      %v369 = vand.u32 %v367, 15
      %v370 = vsub.s32 0, %v369
      %v371 = vsel %vm365, %v370, %v369
      %vm372 = vcmp.ne.s32.totalorder %v371, 0
      %vm373 = vcmp.lt.s32.totalorder %v371, 0
      %vm374 = vmand %vm373, %vm372
      %v375 = vadd.s32 %v371, 16
      %v376 = vsel %vm374, %v375, %v371
      %v377 = vadd.s32 %v376, 4294967295
      %vm378 = vcmp.ge.s32.totalorder %v377, 0
      %vm379 = vcmp.lt.s32.totalorder %v377, 16
      %vm380 = vmand %vm378, %vm379
      %v381 = vadd.s32 %v376, 1
      %vm382 = vcmp.ge.s32.totalorder %v381, 0
      %vm383 = vcmp.lt.s32.totalorder %v381, 16
      %vm384 = vmand %vm382, %vm383
      %v385 = vld [vmem:[#allocation2] sm:$0xf]
      %v386 = vsel %vm380, 1, 0
      %vm387 = vcmp.eq.s32.totalorder %v386, 1
      %v388 = vsel %vm387, 1, 0
      %v389 = vpack.c.b16 %v388, %v388
      %vm390 = vcmp.ne.s16.totalorder %v389, 0
      %v391 = vsel %vm390, 65537, 0
      %392 = vrot.lane.b32.xlu0 %v391, 111
      %v393 = vpop.permute.xlu0 %392
      %v394 = vrot.slane %v393, 6
      %vm395 = vcmask 908288
      %v396 = vsel %vm395, %v394, %v393
      %vm397 = vcmp.ne.s16.totalorder %v396, 0
      %v398 = vsel %vm397, %v385, 0
      %v401 = vunpack.c.l.s4 1983009808
      %v402 = vunpack.c.0.s8 %v401
      %v403 = vlaneseq
      %v404 = vshrl.u32 %v403, 7
      %v405 = vsub.s32 %v402, %v404
      %v406 = vrot.slane %v398, %v405
      %v407 = vcombine.high %v406, %v406
      %vm408 = vcmask 1041408
      %v411 = vsel %vm408, %v406, 0
      %v413 = vsel %vm408, %v407, 0
      %416 = vrot.lane.b32.xlu0 %v411, 17
      %v417 = vpop.permute.xlu0 %416
      %418 = vrot.lane.b32.xlu0 %v413, 17
      %v419 = vpop.permute.xlu0 %418
      %vm420 = vcmask 138240
      %v421 = vsel %vm420, %v417, %v419
      %423 = vst [vmem:[#allocation3] sm:$0xff] %v421
      %v424 = vld [vmem:[#allocation2] sm:$0xf]
      %v427 = vunpack.c.l.s4 1983009808
      %v428 = vunpack.c.0.s8 %v427
      %v429 = vlaneseq
      %v430 = vshrl.u32 %v429, 7
      %v431 = vsub.s32 %v428, %v430
      %v432 = vrot.slane %v424, %v431
      %v433 = vcombine.high %v432, %v432
      %v435 = vsel %vm408, %v432, 0
      %v437 = vsel %vm408, %v433, 0
      %440 = vrot.lane.b32.xlu0 %v435, 16
      %v441 = vpop.permute.xlu0 %440
      %442 = vrot.lane.b32.xlu0 %v437, 16
      %v443 = vpop.permute.xlu0 %442
      %vm444 = vcmask 130048
      %v445 = vsel %vm444, %v441, %v443
      %447 = vst [vmem:[#allocation3 + $0x8] sm:$0xff] %v445
      %v448 = vld [vmem:[#allocation2] sm:$0xf]
      %v449 = vsel %vm384, 1, 0
      %vm450 = vcmp.eq.s32.totalorder %v449, 1
      %v451 = vsel %vm450, 1, 0
      %v452 = vpack.c.b16 %v451, %v451
      %vm453 = vcmp.ne.s16.totalorder %v452, 0
      %v454 = vsel %vm453, 65537, 0
      %455 = vrot.lane.b32.xlu0 %v454, 113
      %v456 = vpop.permute.xlu0 %455
      %v457 = vrot.slane %v456, 6
      %vm458 = vcmask 924672
      %v459 = vsel %vm458, %v457, %v456
      %vm460 = vcmp.ne.s16.totalorder %v459, 0
      %v461 = vsel %vm460, %v448, 0
      %v464 = vunpack.c.l.s4 1983009808
      %v465 = vunpack.c.0.s8 %v464
      %v466 = vlaneseq
      %v467 = vshrl.u32 %v466, 7
      %v468 = vsub.s32 %v465, %v467
      %v469 = vrot.slane %v461, %v468
      %v470 = vcombine.high %v469, %v469
      %v472 = vsel %vm408, %v469, 0
      %v474 = vsel %vm408, %v470, 0
      %477 = vrot.lane.b32.xlu0 %v472, 15
      %v478 = vpop.permute.xlu0 %477
      %479 = vrot.lane.b32.xlu0 %v474, 15
      %v480 = vpop.permute.xlu0 %479
      %vm481 = vcmask 121856
      %v482 = vsel %vm481, %v478, %v480
      %484 = vst [vmem:[#allocation3 + $0x10] sm:$0xff] %v482
      %v485 = vld [vmem:[#allocation2] sm:$0xf]
      %486 = vrot.lane.b32.xlu0 %v391, 127
      %v487 = vpop.permute.xlu0 %486
      %v488 = vrot.slane %v487, 6
      %vm489 = vcmask 1039360
      %v490 = vsel %vm489, %v488, %v487
      %vm491 = vcmp.ne.s16.totalorder %v490, 0
      %v492 = vsel %vm491, %v485, 0
      %v495 = vunpack.c.l.s4 1983009808
      %v496 = vunpack.c.0.s8 %v495
      %v497 = vlaneseq
      %v498 = vshrl.u32 %v497, 7
      %v499 = vsub.s32 %v496, %v498
      %v500 = vrot.slane %v492, %v499
      %v501 = vcombine.high %v500, %v500
      %v503 = vsel %vm408, %v500, 0
      %v505 = vsel %vm408, %v501, 0
      %508 = vrot.lane.b32.xlu0 %v503, 1
      %v509 = vpop.permute.xlu0 %508
      %510 = vrot.lane.b32.xlu0 %v505, 1
      %v511 = vpop.permute.xlu0 %510
      %vm512 = vcmask 7168
      %v513 = vsel %vm512, %v509, %v511
      %515 = vst [vmem:[#allocation3 + $0x18] sm:$0xff] %v513
      %v516 = vld [vmem:[#allocation2 + $0x2] sm:$0x3]
      %v518 = vsel %vm408, %v516, 0
      %520 = vst [vmem:[#allocation3 + $0x20] sm:$0xff] %v518
      %v521 = vld [vmem:[#allocation2 + $0x2] sm:$0xf]
      %522 = vrot.lane.b32.xlu0 %v454, 1
      %v523 = vpop.permute.xlu0 %522
      %v524 = vrot.slane %v523, 6
      %v525 = vsel %vm512, %v524, %v523
      %vm526 = vcmp.ne.s16.totalorder %v525, 0
      %v527 = vsel %vm526, %v521, 0
      %v530 = vunpack.c.l.s4 1983009808
      %v531 = vunpack.c.0.s8 %v530
      %v532 = vlaneseq
      %v533 = vshrl.u32 %v532, 7
      %v534 = vsub.s32 %v531, %v533
      %v535 = vrot.slane %v527, %v534
      %v536 = vcombine.high %v535, %v535
      %v538 = vsel %vm408, %v535, 0
      %v540 = vsel %vm408, %v536, 0
      %543 = vrot.lane.b32.xlu0 %v538, 127
      %v544 = vpop.permute.xlu0 %543
      %545 = vrot.lane.b32.xlu0 %v540, 127
      %v546 = vpop.permute.xlu0 %545
      %v547 = vsel %vm489, %v544, %v546
      %549 = vst [vmem:[#allocation3 + $0x28] sm:$0xff] %v547
      %v550 = vld [vmem:[#allocation2 + $0x2] sm:$0xf]
      %551 = vrot.lane.b32.xlu0 %v391, 15
      %v552 = vpop.permute.xlu0 %551
      %v553 = vrot.slane %v552, 6
      %v554 = vsel %vm481, %v553, %v552
      %vm555 = vcmp.ne.s16.totalorder %v554, 0
      %v556 = vsel %vm555, %v550, 0
      %v559 = vunpack.c.l.s4 1983009808
      %v560 = vunpack.c.0.s8 %v559
      %v561 = vlaneseq
      %v562 = vshrl.u32 %v561, 7
      %v563 = vsub.s32 %v560, %v562
      %v564 = vrot.slane %v556, %v563
      %v565 = vcombine.high %v564, %v564
      %v567 = vsel %vm408, %v564, 0
      %v569 = vsel %vm408, %v565, 0
      %572 = vrot.lane.b32.xlu0 %v567, 113
      %v573 = vpop.permute.xlu0 %572
      %574 = vrot.lane.b32.xlu0 %v569, 113
      %v575 = vpop.permute.xlu0 %574
      %v576 = vsel %vm458, %v573, %v575
      %578 = vst [vmem:[#allocation3 + $0x30] sm:$0xff] %v576
      %v579 = vld [vmem:[#allocation2 + $0x2] sm:$0xf]
      %v582 = vunpack.c.l.s4 1983009808
      %v583 = vunpack.c.0.s8 %v582
      %v584 = vlaneseq
      %v585 = vshrl.u32 %v584, 7
      %v586 = vsub.s32 %v583, %v585
      %v587 = vrot.slane %v579, %v586
      %v588 = vcombine.high %v587, %v587
      %v590 = vsel %vm408, %v587, 0
      %v592 = vsel %vm408, %v588, 0
      %595 = vrot.lane.b32.xlu0 %v590, 112
      %v596 = vpop.permute.xlu0 %595
      %597 = vrot.lane.b32.xlu0 %v592, 112
      %v598 = vpop.permute.xlu0 %597
      %vm599 = vcmask 916480
      %v600 = vsel %vm599, %v596, %v598
      %602 = vst [vmem:[#allocation3 + $0x38] sm:$0xff] %v600
      %v603 = vld [vmem:[#allocation2 + $0x2] sm:$0xf]
      %604 = vrot.lane.b32.xlu0 %v454, 17
      %v605 = vpop.permute.xlu0 %604
      %v606 = vrot.slane %v605, 6
      %v607 = vsel %vm420, %v606, %v605
      %vm608 = vcmp.ne.s16.totalorder %v607, 0
      %v609 = vsel %vm608, %v603, 0
      %v612 = vunpack.c.l.s4 1983009808
      %v613 = vunpack.c.0.s8 %v612
      %v614 = vlaneseq
      %v615 = vshrl.u32 %v614, 7
      %v616 = vsub.s32 %v613, %v615
      %v617 = vrot.slane %v609, %v616
      %v618 = vcombine.high %v617, %v617
      %v620 = vsel %vm408, %v617, 0
      %v622 = vsel %vm408, %v618, 0
      %625 = vrot.lane.b32.xlu0 %v620, 111
      %v626 = vpop.permute.xlu0 %625
      %627 = vrot.lane.b32.xlu0 %v622, 111
      %v628 = vpop.permute.xlu0 %627
      %v629 = vsel %vm395, %v626, %v628
      %631 = vst [vmem:[#allocation3 + $0x40] sm:$0xff] %v629
      %v632 = vld [vmem:[%s3] sm:$0xf]
      %v633 = vld [vmem:[#allocation3] sm:$0xff]
      %v634 = vld [vmem:[#allocation3 + $0x8] sm:$0xff]
      %v635 = vld [vmem:[#allocation3 + $0x10] sm:$0xff]
      %v636 = vld [vmem:[#allocation3 + $0x18] sm:$0xff]
      %v637 = vld [vmem:[#allocation3 + $0x20] sm:$0xff]
      %v638 = vld [vmem:[#allocation3 + $0x28] sm:$0xff]
      %v639 = vld [vmem:[#allocation3 + $0x30] sm:$0xff]
      %v640 = vld [vmem:[#allocation3 + $0x38] sm:$0xff]
      %v641 = vld [vmem:[#allocation3 + $0x40] sm:$0xff]
      %v644 = vunpack.c.l.s4 1983009808
      %v645 = vunpack.c.0.s8 %v644
      %v646 = vlaneseq
      %v647 = vshrl.u32 %v646, 7
      %v648 = vsub.s32 %v645, %v647
      %v649 = vrot.slane %v632, %v648
      %v650 = vcombine.high %v649, %v649
      %vm652 = vcmask 130048
      %v654 = vsel %vm652, %v650, 0
      %656 = vmatprep.subr.bf16.mxu0 0
      %657 = vmatpush1.bf16.msra.mxu0 %v633
      %658 = vmatprep.subr.bf16.mxu0 0
      %659 = vmatpush1.bf16.msra.mxu0 %v634
      %660 = vmatprep.subr.bf16.mxu0 0
      %661 = vmatpush1.bf16.msra.mxu0 %v635
      %662 = vmatprep.subr.bf16.mxu0 0
      %663 = vmatpush1.bf16.msra.mxu0 %v636
      %664 = vmatprep.subr.bf16.mxu0 0
      %665 = vmatpush1.bf16.msra.mxu0 %v637
      %666 = vmatprep.subr.bf16.mxu0 0
      %667 = vmatpush1.bf16.msra.mxu0 %v638
      %668 = vmatprep.subr.bf16.mxu0 0
      %669 = vmatpush1.bf16.msra.mxu0 %v639
      %670 = vmatprep.subr.bf16.mxu0 0
      %671 = vmatpush1.bf16.msra.mxu0 %v640
      %672 = vmatprep.subr.bf16.mxu0 0
      %673 = vmatpush1.bf16.msra.mxu0 %v641
      %674 = vmatprep.subr.bf16.mxu0 0
      %675 = vmatpush1.bf16.msra.mxu0 0
      %676 = vmatprep.subr.bf16.mxu0 0
      %677 = vmatpush1.bf16.msra.mxu0 0
      %678 = vmatprep.subr.bf16.mxu0 0
      %679 = vmatpush1.bf16.msra.mxu0 0
      %680 = vmatprep.subr.bf16.mxu0 0
      %681 = vmatpush1.bf16.msra.mxu0 0
      %682 = vmatprep.subr.bf16.mxu0 0
      %683 = vmatpush1.bf16.msra.mxu0 0
      %684 = vmatprep.subr.bf16.mxu0 0
      %685 = vmatpush1.bf16.msra.mxu0 0
      %686 = vmatprep.subr.bf16.mxu0 0
      %687 = vmatpush1.bf16.msra.mxu0 0
      %688 = vmatprep.mubr.bf16.mxu0 %v654
      %689 = vmatmul.mubr.bf16.gmra.mrb[0].mxu0 %v649
      %v690 = vpop.f32.mrb[0].mxu0
      %v691 = vadd.f32 0.0, %v690
      %v692 = vpop.f32.mrb[0].mxu0
      %v693 = vpop.f32.mrb[0].mxu0
      %v694 = vpop.f32.mrb[0].mxu0
      %695 = vdwg.mxu0
      %696 = vst [vmem:[%s332] sm:$0xf] %v691
      %p697 = scmp.lt.s32.totalorder %s19, 1
      %s698 = scalar_select %p697, %s19, 1
      %p699 = scmp.lt.s32.totalorder %s20, 1
      %s700 = scalar_select %p699, %s20, 1
      %s701 = smul.addr %s698, 2
      %s702 = sadd.s32 %s700, %s701
      %s703 = smul.addr %s702, 4
      %s704 = scalar_lea.vmem %s4, %s703
      // Predicated region
      $region53: #{adaptor_conv.1} parent=35 // pred_check
        %p705 = pneg %p164
      $region54: #{adaptor_conv.1} parent=35 // pred_check_branch
        %707 = sbr.rel (%p705) target = $region56
      $region55: #{adaptor_conv.1} parent=35 // pred_region
        _
      $region56: #{adaptor_conv.1} parent=35 // pred_fallthru
        _
    $region36: #{adaptor_conv.1} parent=5 // pred_fallthru
      _
    %p708 = scmp.le.s32.totalorder 2, %s10
    // Predicated region
    $region57: #{adaptor_conv.1} parent=5 // pred_check
      %p709 = pneg %p708
    $region58: #{adaptor_conv.1} parent=5 // pred_check_branch
      %711 = sbr.rel (%p709) target = $region60
    $region59: #{adaptor_conv.1} parent=5 // pred_region
      %s712 = ssub.s32 %s10, 2
      // Predicated region
      $region61: #{adaptor_conv.1} parent=59 // pred_check
        %p713 = pneg %p170
      $region62: #{adaptor_conv.1} parent=59 // pred_check_branch
        %715 = sbr.rel (%p713) target = $region64
      $region63: #{adaptor_conv.1} parent=59 // pred_region
        %p716 = scmp.lt.s32.totalorder %s21, 1
        %s717 = scalar_select %p716, %s21, 1
        %p718 = scmp.lt.s32.totalorder %s22, 1
        %s719 = scalar_select %p718, %s22, 1
        %s720 = smul.addr %s717, 2
        %s721 = sadd.s32 %s719, %s720
        %s722 = smul.addr %s721, 4
        %s723 = scalar_lea.vmem %s4, %s722
      $region64: #{adaptor_conv.1} parent=59 // pred_fallthru
        _
    $region60: #{adaptor_conv.1} parent=5 // pred_fallthru
      _
  $region6: #{adaptor_conv.1} parent=0 // loop_footer
    %s14 = sadd.s32 1, %s10
  $region7: #{adaptor_conv.1} parent=0 // loop_footer_branch
    %9 = sbr.rel target = $region3
  $region8: #{adaptor_conv.1} parent=0 // loop_exit
    _

</llo_original>
